<compile_context>
chip_gen: v7x
topology: tpu7x:2x2x1
jax: 0.10.0
libtpu: 0.0.40
codegen_flags: <defaults>
</compile_context>

<pallas_src>
import jax
import jax.numpy as jnp
from jax.experimental import pallas as pl
from jax.experimental.pallas import tpu as pltpu


def _round_up(x, m):
    return (x + m - 1) // m * m


def _cdiv(a, b):
    return (a + b - 1) // b


def _mlp_kernel(x_ref, w1_ref, w2_ref, w3_ref, small_ref, o_ref):
    """Fused forward pass for one batch tile.

    x_ref    : (tm, D)  f32   -- native row-major layout, contiguous HBM tile
    w1_ref   : (64, D)  bf16
    w2_ref   : (32, 64) bf16
    w3_ref   : (16, 32) bf16
    small_ref: (129, 1) f32   -- [b1(64) | b2(32) | b3(16) | w4(16) | b4(1)]
    o_ref    : (1, tm)  f32   -- lane-dense output slab (batch on lanes)
    """
    # Cast on the VPU, then move the batch onto the lane axis with an XLU
    # transpose; both ride otherwise-idle slots and hide under the input DMA.
    x = x_ref[...].astype(w1_ref.dtype)      # (tm, D) bf16
    xt = x.T                                 # (D, tm)

    small = small_ref[...]                   # (129, 1) f32, statically sliced
    b1 = small[0:64]                         # (64, 1)
    b2 = small[64:96]                        # (32, 1)
    b3 = small[96:112]                       # (16, 1)
    w4 = small[112:128]                      # (16, 1)
    b4 = small[128:129]                      # (1, 1)

    h1 = jnp.dot(w1_ref[...], xt, preferred_element_type=jnp.float32) + b1
    h1 = jnp.maximum(h1, 0.0)                                      # (64, tm)

    h2 = jnp.dot(w2_ref[...], h1.astype(w2_ref.dtype),
                 preferred_element_type=jnp.float32) + b2
    h2 = jnp.maximum(h2, 0.0)                                      # (32, tm)

    h3 = jnp.dot(w3_ref[...], h2.astype(w3_ref.dtype),
                 preferred_element_type=jnp.float32) + b3
    h3 = jnp.maximum(h3, 0.0)                                      # (16, tm)

    # Final 16 -> 1 layer on the VPU/XLU (broadcast-multiply + sublane reduce)
    # instead of a 1-wide MXU matmul.
    logits = jnp.sum(h3 * w4, axis=0, keepdims=True) + b4          # (1, tm)
    o_ref[...] = jax.nn.sigmoid(logits).astype(o_ref.dtype)


def _choose_tm(B, D):
    """Pick a 128-aligned batch tile.

    Targets ~1 MiB per f32 input tile (amortizes ~0.35us per-grid-step
    overhead), keeps total VMEM under ~20 MiB (fits v5e/v6e/v7x with
    vmem_limit_bytes = 32 MiB), and keeps >= 4 grid steps when the batch is
    large enough so both v7x TensorCores get >= 2 steps (double buffering).
    """
    # Per-batch-row VMEM bytes: x f32 double buffer (8*D) + bf16 copy and its
    # transpose (4*D) + f32/bf16 intermediates + output + slack (~640 B).
    per_row = 8 * D + 4 * D + 640
    vmem_budget = 20 << 20

    tm = max(512, (1 << 20) // (4 * D))                 # ~1 MiB f32 input tile
    tm = min(tm, max(128, vmem_budget // per_row))      # VMEM cap
    if B >= 4 * 128:
        tm = min(tm, _round_up(_cdiv(B, 4), 128))       # >= 4 grid steps
    tm = min(tm, _round_up(B, 128))                     # don't exceed padded batch
    tm = max(128, (tm // 128) * 128)                    # 128-aligned lanes
    return int(tm)


def ann_model_forward(x, params, *, compute_dtype=jnp.bfloat16):
    """Forward pass matching PyTorch ANNModel.

    x: (B, D) float32 (native layout -- no wrapper transpose/cast/pad pass).
    params: PyTorch-layout weights w_i (out, in) and biases b_i (out,).
    Precision: x and w1..w3 are bf16 on the MXU with f32 accumulation;
    bias/ReLU/final layer/sigmoid in f32 (intentional ~1e-2 tolerance vs f32).
    """
    B, D = x.shape
    tm = _choose_tm(B, D)

    # For tiny batches (< one tile) pad the rows once (cheap) so the single
    # block is fully in bounds; for larger batches use a cdiv grid with a
    # ragged last tile -- out-of-bounds rows read garbage, but batch columns
    # are independent and those output columns are sliced off below.
    if B < tm:
        x_in = jnp.pad(x, ((0, tm - B), (0, 0)))
        b_rows = tm
    else:
        x_in = x
        b_rows = B
    grid = (_cdiv(b_rows, tm),)
    B_pad = grid[0] * tm          # padded output alloc -> unmasked lane-dense stores

    w1c = params["w1"].astype(compute_dtype)             # (64, D)
    w2c = params["w2"].astype(compute_dtype)             # (32, 64)
    w3c = params["w3"].astype(compute_dtype)             # (16, 32)
    # Coalesce the five tiny (N,1)/(1,1) operands into a single array -> one DMA.
    small = jnp.concatenate([
        jnp.asarray(params["b1"], jnp.float32).reshape(64, 1),
        jnp.asarray(params["b2"], jnp.float32).reshape(32, 1),
        jnp.asarray(params["b3"], jnp.float32).reshape(16, 1),
        jnp.asarray(params["w4"], jnp.float32).reshape(16, 1),
        jnp.asarray(params["b4"], jnp.float32).reshape(1, 1),
    ], axis=0)                                           # (129, 1) f32

    def full(a):
        return pl.BlockSpec(a.shape, lambda i: (0,) * a.ndim)

    weight_bytes = sum(int(a.size) * int(jnp.dtype(a.dtype).itemsize)
                       for a in (w1c, w2c, w3c, small))
    n_rows = B_pad
    cost = pl.CostEstimate(
        flops=2 * n_rows * (D * 64 + 64 * 32 + 32 * 16 + 16),
        transcendentals=n_rows,                           # sigmoid exp
        bytes_accessed=n_rows * D * 4 + n_rows * 4 + weight_bytes,
    )

    out_t = pl.pallas_call(
        _mlp_kernel,
        out_shape=jax.ShapeDtypeStruct((1, B_pad), jnp.float32),
        grid_spec=pltpu.PrefetchScalarGridSpec(
            num_scalar_prefetch=0,
            grid=grid,
            in_specs=[
                # Contiguous (tm, D) f32 tile of the row-major input.
                pl.BlockSpec((tm, D), lambda i: (i, 0)),
                full(w1c), full(w2c), full(w3c), full(small),
            ],
            out_specs=pl.BlockSpec((1, tm), lambda i: (0, i)),
        ),
        compiler_params=pltpu.CompilerParams(
            dimension_semantics=("parallel",),
            vmem_limit_bytes=32 * 1024 * 1024,
        ),
        cost_estimate=cost,
    )(x_in, w1c, w2c, w3c, small)

    # Drop padded/ragged batch columns: (1, B_pad) -> (B, 1)
    return out_t[0, :B].reshape(B, 1)


def init_params(key, input_dim):
    """PyTorch nn.Linear default init: U[-1/sqrt(fan_in), +1/sqrt(fan_in)].

    Weights stored in PyTorch layout (out_features, in_features), biases (out,).
    """
    dims = [(input_dim, 64), (64, 32), (32, 16), (16, 1)]
    params = {}
    for idx, (fan_in, fan_out) in enumerate(dims, start=1):
        key, kw, kb = jax.random.split(key, 3)
        bound = 1.0 / jnp.sqrt(fan_in)
        params[f"w{idx}"] = jax.random.uniform(
            kw, (fan_out, fan_in), jnp.float32, -bound, bound)
        params[f"b{idx}"] = jax.random.uniform(
            kb, (fan_out,), jnp.float32, -bound, bound)
    return params


def reference_forward_f32(x, params):
    """Pure-JAX f32 reference matching the PyTorch module exactly."""
    h = jnp.maximum(x @ params["w1"].T + params["b1"], 0.0)
    h = jnp.maximum(h @ params["w2"].T + params["b2"], 0.0)
    h = jnp.maximum(h @ params["w3"].T + params["b3"], 0.0)
    return jax.nn.sigmoid(h @ params["w4"].T + params["b4"]).reshape(-1, 1)


def reference_forward_matched(x, params, compute_dtype=jnp.bfloat16):
    """Reference using the same bf16-in / f32-accumulate precision as the kernel."""
    cd = compute_dtype
    h = jnp.maximum(jnp.dot(x.astype(cd), params["w1"].T.astype(cd),
                            preferred_element_type=jnp.float32) + params["b1"], 0.0)
    h = jnp.maximum(jnp.dot(h.astype(cd), params["w2"].T.astype(cd),
                            preferred_element_type=jnp.float32) + params["b2"], 0.0)
    h = jnp.maximum(jnp.dot(h.astype(cd), params["w3"].T.astype(cd),
                            preferred_element_type=jnp.float32) + params["b3"], 0.0)
    logits = h @ params["w4"].T.astype(jnp.float32) + params["b4"]
    return jax.nn.sigmoid(logits).reshape(-1, 1)


if __name__ == "__main__":
    key = jax.random.PRNGKey(0)
    key, kx = jax.random.split(key)

    batch, input_dim = 16, 32
    x = jax.random.normal(kx, (batch, input_dim), jnp.float32)
    params = init_params(key, input_dim)

    out = jax.block_until_ready(ann_model_forward(x, params))
    assert out.shape == (batch, 1)

    ref_matched = reference_forward_matched(x, params)
    ref_f32 = reference_forward_f32(x, params)
    assert jnp.allclose(out, ref_matched, atol=1e-3, rtol=1e-3), \
        "mismatch vs precision-matched reference"
    assert jnp.allclose(out, ref_f32, atol=3e-2, rtol=3e-2), \
        "mismatch vs f32 reference"

    print("KERNEL_OK")
</pallas_src>

<mosaic_0001>
module attributes {stable_mosaic.version = 11 : i64} {
  func.func @_mlp_kernel(%arg0: i32, %arg1: memref<128x32xf32, #tpu.memory_space<vmem>>, %arg2: memref<64x32xbf16, #tpu.memory_space<vmem>>, %arg3: memref<32x64xbf16, #tpu.memory_space<vmem>>, %arg4: memref<16x32xbf16, #tpu.memory_space<vmem>>, %arg5: memref<129x1xf32, #tpu.memory_space<vmem>>, %arg6: memref<1x128xf32, #tpu.memory_space<vmem>>) attributes {dimension_semantics = [#tpu.dimension_semantics<parallel>], iteration_bounds = array<i64: 1>, scalar_prefetch = 0 : i64, scratch_operands = 0 : i64, tpu.core_type = #tpu.core_type<tc>, window_params = [{transform_indices = @transform_0, window_bounds = array<i64: 128, 32>}, {pipeline_mode = #tpu.pipeline_mode<synchronous>, transform_indices = @transform_1, window_bounds = array<i64: 64, 32>}, {pipeline_mode = #tpu.pipeline_mode<synchronous>, transform_indices = @transform_2, window_bounds = array<i64: 32, 64>}, {pipeline_mode = #tpu.pipeline_mode<synchronous>, transform_indices = @transform_3, window_bounds = array<i64: 16, 32>}, {pipeline_mode = #tpu.pipeline_mode<synchronous>, transform_indices = @transform_4, window_bounds = array<i64: 129, 1>}, {transform_indices = @transform_5, window_bounds = array<i64: 1, 128>}]} {
    %c0 = arith.constant 0 : index
    %c0_0 = arith.constant 0 : index
    %0 = vector.load %arg1[%c0, %c0_0] : memref<128x32xf32, #tpu.memory_space<vmem>>, vector<128x32xf32>
    %1 = arith.truncf %0 : vector<128x32xf32> to vector<128x32xbf16>
    %2 = tpu.transpose %1, [1, 0] : vector<128x32xbf16> -> vector<32x128xbf16>
    %c0_1 = arith.constant 0 : index
    %c0_2 = arith.constant 0 : index
    %3 = vector.load %arg5[%c0_1, %c0_2] : memref<129x1xf32, #tpu.memory_space<vmem>>, vector<129x1xf32>
    %4 = vector.extract_strided_slice %3 {offsets = [0, 0], sizes = [64, 1], strides = [1, 1]} : vector<129x1xf32> to vector<64x1xf32>
    %5 = vector.extract_strided_slice %3 {offsets = [64, 0], sizes = [32, 1], strides = [1, 1]} : vector<129x1xf32> to vector<32x1xf32>
    %6 = vector.extract_strided_slice %3 {offsets = [96, 0], sizes = [16, 1], strides = [1, 1]} : vector<129x1xf32> to vector<16x1xf32>
    %7 = vector.extract_strided_slice %3 {offsets = [112, 0], sizes = [16, 1], strides = [1, 1]} : vector<129x1xf32> to vector<16x1xf32>
    %8 = vector.extract_strided_slice %3 {offsets = [128, 0], sizes = [1, 1], strides = [1, 1]} : vector<129x1xf32> to vector<1x1xf32>
    %c0_3 = arith.constant 0 : index
    %c0_4 = arith.constant 0 : index
    %9 = vector.load %arg2[%c0_3, %c0_4] : memref<64x32xbf16, #tpu.memory_space<vmem>>, vector<64x32xbf16>
    %cst = arith.constant dense<0.000000e+00> : vector<64x128xf32>
    %10 = tpu.matmul %9, %2, %cst {dimension_numbers = #tpu.dot_dimension_numbers<[1], [0], [0], [1], [0, 0, 1, 1], [], []>} : vector<64x32xbf16>, vector<32x128xbf16>, vector<64x128xf32> -> vector<64x128xf32>
    %11 = vector.broadcast %4 : vector<64x1xf32> to vector<64x128xf32>
    %12 = arith.addf %10, %11 : vector<64x128xf32>
    %cst_5 = arith.constant 0.000000e+00 : f32
    %13 = vector.broadcast %cst_5 : f32 to vector<64x128xf32>
    %14 = arith.maximumf %12, %13 : vector<64x128xf32>
    %c0_6 = arith.constant 0 : index
    %c0_7 = arith.constant 0 : index
    %15 = vector.load %arg3[%c0_6, %c0_7] : memref<32x64xbf16, #tpu.memory_space<vmem>>, vector<32x64xbf16>
    %16 = arith.truncf %14 : vector<64x128xf32> to vector<64x128xbf16>
    %cst_8 = arith.constant dense<0.000000e+00> : vector<32x128xf32>
    %17 = tpu.matmul %15, %16, %cst_8 {dimension_numbers = #tpu.dot_dimension_numbers<[1], [0], [0], [1], [0, 0, 1, 1], [], []>} : vector<32x64xbf16>, vector<64x128xbf16>, vector<32x128xf32> -> vector<32x128xf32>
    %18 = vector.broadcast %5 : vector<32x1xf32> to vector<32x128xf32>
    %19 = arith.addf %17, %18 : vector<32x128xf32>
    %cst_9 = arith.constant 0.000000e+00 : f32
    %20 = vector.broadcast %cst_9 : f32 to vector<32x128xf32>
    %21 = arith.maximumf %19, %20 : vector<32x128xf32>
    %c0_10 = arith.constant 0 : index
    %c0_11 = arith.constant 0 : index
    %22 = vector.load %arg4[%c0_10, %c0_11] : memref<16x32xbf16, #tpu.memory_space<vmem>>, vector<16x32xbf16>
    %23 = arith.truncf %21 : vector<32x128xf32> to vector<32x128xbf16>
    %cst_12 = arith.constant dense<0.000000e+00> : vector<16x128xf32>
    %24 = tpu.matmul %22, %23, %cst_12 {dimension_numbers = #tpu.dot_dimension_numbers<[1], [0], [0], [1], [0, 0, 1, 1], [], []>} : vector<16x32xbf16>, vector<32x128xbf16>, vector<16x128xf32> -> vector<16x128xf32>
    %25 = vector.broadcast %6 : vector<16x1xf32> to vector<16x128xf32>
    %26 = arith.addf %24, %25 : vector<16x128xf32>
    %cst_13 = arith.constant 0.000000e+00 : f32
    %27 = vector.broadcast %cst_13 : f32 to vector<16x128xf32>
    %28 = arith.maximumf %26, %27 : vector<16x128xf32>
    %29 = vector.broadcast %7 : vector<16x1xf32> to vector<16x128xf32>
    %30 = arith.mulf %28, %29 : vector<16x128xf32>
    %cst_14 = arith.constant dense<0.000000e+00> : vector<128xf32>
    %31 = vector.multi_reduction <add>, %30, %cst_14 [0] : vector<16x128xf32> to vector<128xf32>
    %32 = vector.shape_cast %31 : vector<128xf32> to vector<1x128xf32>
    %33 = vector.broadcast %8 : vector<1x1xf32> to vector<1x128xf32>
    %34 = arith.addf %32, %33 : vector<1x128xf32>
    %35 = arith.negf %34 : vector<1x128xf32>
    %36 = math.exp %35 : vector<1x128xf32>
    %cst_15 = arith.constant 1.000000e+00 : f32
    %37 = vector.broadcast %cst_15 : f32 to vector<1x128xf32>
    %38 = arith.addf %37, %36 : vector<1x128xf32>
    %39 = arith.divf %37, %38 : vector<1x128xf32>
    %c0_16 = arith.constant 0 : index
    %c0_17 = arith.constant 0 : index
    %40 = vector.load %arg6[%c0_16, %c0_17] : memref<1x128xf32, #tpu.memory_space<vmem>>, vector<1x128xf32>
    tpu.vector_store %arg6[%c0_16, %c0_17], %39 {strides = array<i32>} : memref<1x128xf32, #tpu.memory_space<vmem>>, vector<1x128xf32>,
    return
  }
  func.func @transform_0(%arg0: i32) -> (i32, i32) {
    %c0_i32 = arith.constant 0 : i32
    %c0_i32_0 = arith.constant 0 : i32
    return %arg0, %c0_i32 : i32, i32
  }
  func.func @transform_1(%arg0: i32) -> (i32, i32) {
    %c0_i32 = arith.constant 0 : i32
    %c0_i32_0 = arith.constant 0 : i32
    %c0_i32_1 = arith.constant 0 : i32
    return %c0_i32, %c0_i32_0 : i32, i32
  }
  func.func @transform_2(%arg0: i32) -> (i32, i32) {
    %c0_i32 = arith.constant 0 : i32
    %c0_i32_0 = arith.constant 0 : i32
    %c0_i32_1 = arith.constant 0 : i32
    return %c0_i32, %c0_i32_0 : i32, i32
  }
  func.func @transform_3(%arg0: i32) -> (i32, i32) {
    %c0_i32 = arith.constant 0 : i32
    %c0_i32_0 = arith.constant 0 : i32
    %c0_i32_1 = arith.constant 0 : i32
    return %c0_i32, %c0_i32_0 : i32, i32
  }
  func.func @transform_4(%arg0: i32) -> (i32, i32) {
    %c0_i32 = arith.constant 0 : i32
    %c0_i32_0 = arith.constant 0 : i32
    %c0_i32_1 = arith.constant 0 : i32
    return %c0_i32, %c0_i32_0 : i32, i32
  }
  func.func @transform_5(%arg0: i32) -> (i32, i32) {
    %c0_i32 = arith.constant 0 : i32
    %c0_i32_0 = arith.constant 0 : i32
    return %c0_i32, %arg0 : i32, i32
  }
}

</mosaic_0001>

<llo_original>
// kernel: tpu_custom_call.1
$region0: #{tpu_custom_call.1}
  #allocation0 [shape = 'u32[]', space=smem, size = 0x4, offset = 0x4, fixed_abs, tag = 'smem constant byte address 0x4 - core index']
  #allocation1 [shape = 'u32[144,128]{1,0:T(1,128)}', space=vmem, size = 0x12000, scoped, tag = 'internal scratch']
  %s0 = inlined_call_operand.vmem [shape: f32[128,32], index: 0, kind: input, shape index: {}]
  %s1 = inlined_call_operand.vmem [shape: bf16[64,32], index: 1, kind: input, shape index: {}]
  %s2 = inlined_call_operand.vmem [shape: bf16[32,64], index: 2, kind: input, shape index: {}]
  %s3 = inlined_call_operand.vmem [shape: bf16[16,32], index: 3, kind: input, shape index: {}]
  %s4 = inlined_call_operand.vmem [shape: f32[129,1], index: 4, kind: input, shape index: {}]
  %s5 = inlined_call_operand.hbm [shape: f32[1,128], index: 5, kind: output, shape index: {}]
  %s6 = sld [smem:[#allocation0]]
  $region30: #{tpu_custom_call.1} parent=0
    _
  %s8 = ssub.s32 1, %s6
  %s9 = scalar_select 0, %s8, %s6
  $region1: #{tpu_custom_call.1} parent=0
    #allocation2 [shape = 'u8[512]{0}', space=vmem, size = 0x400, scoped, tag = 'output window, operand 0, single buffered']
    #allocation3 [shape = 's32[1]{0}', space=sflag, size = 0x4, scoped, tag = 'scoped memory for tpu_custom_call.1']
    %10 = vsyncpa [#allocation3], 0
    // Predicated region
    $region2: #{tpu_custom_call.1} parent=1 // pred_check
      _
    $region3: #{tpu_custom_call.1} parent=1 // pred_check_branch
      %12 = sbr.rel (0) target = $region5
    $region4: #{tpu_custom_call.1} parent=1 // pred_region
      _
    $region5: #{tpu_custom_call.1} parent=1 // pred_fallthru
      _
    // Predicated region
    $region6: #{tpu_custom_call.1} parent=1 // pred_check
      _
    $region7: #{tpu_custom_call.1} parent=1 // pred_check_branch
      %14 = sbr.rel (0) target = $region9
    $region8: #{tpu_custom_call.1} parent=1 // pred_region
      _
    $region9: #{tpu_custom_call.1} parent=1 // pred_fallthru
      _
    // Predicated region
    $region10: #{tpu_custom_call.1} parent=1 // pred_check
      _
    $region11: #{tpu_custom_call.1} parent=1 // pred_check_branch
      %16 = sbr.rel (0) target = $region13
    $region12: #{tpu_custom_call.1} parent=1 // pred_region
      _
    $region13: #{tpu_custom_call.1} parent=1 // pred_fallthru
      _
    // Predicated region
    $region14: #{tpu_custom_call.1} parent=1 // pred_check
      _
    $region15: #{tpu_custom_call.1} parent=1 // pred_check_branch
      %18 = sbr.rel (0) target = $region17
    $region16: #{tpu_custom_call.1} parent=1 // pred_region
      _
    $region17: #{tpu_custom_call.1} parent=1 // pred_fallthru
      _
    // Predicated region
    $region18: #{tpu_custom_call.1} parent=1 // pred_check
      _
    $region19: #{tpu_custom_call.1} parent=1 // pred_check_branch
      %20 = sbr.rel (0) target = $region21
    $region20: #{tpu_custom_call.1} parent=1 // pred_region
      _
    $region21: #{tpu_custom_call.1} parent=1 // pred_fallthru
      _
    %v22 = vld [vmem:[%s0] sm:$0xff]
    %v23 = vld [vmem:[%s0 + $0x8] sm:$0xff]
    %v24 = vld [vmem:[%s0 + $0x10] sm:$0xff]
    %v25 = vld [vmem:[%s0 + $0x18] sm:$0xff]
    %v26 = vld [vmem:[%s0 + $0x20] sm:$0xff]
    %v27 = vld [vmem:[%s0 + $0x28] sm:$0xff]
    %v28 = vld [vmem:[%s0 + $0x30] sm:$0xff]
    %v29 = vld [vmem:[%s0 + $0x38] sm:$0xff]
    %v30 = vld [vmem:[%s0 + $0x40] sm:$0xff]
    %v31 = vld [vmem:[%s0 + $0x48] sm:$0xff]
    %v32 = vld [vmem:[%s0 + $0x50] sm:$0xff]
    %v33 = vld [vmem:[%s0 + $0x58] sm:$0xff]
    %v34 = vld [vmem:[%s0 + $0x60] sm:$0xff]
    %v35 = vld [vmem:[%s0 + $0x68] sm:$0xff]
    %v36 = vld [vmem:[%s0 + $0x70] sm:$0xff]
    %v37 = vld [vmem:[%s0 + $0x78] sm:$0xff]
    %v38 = vpack.c.bf16 %v23, %v22
    %v39 = vpack.c.bf16 %v25, %v24
    %v40 = vpack.c.bf16 %v27, %v26
    %v41 = vpack.c.bf16 %v29, %v28
    %v42 = vpack.c.bf16 %v31, %v30
    %v43 = vpack.c.bf16 %v33, %v32
    %v44 = vpack.c.bf16 %v35, %v34
    %v45 = vpack.c.bf16 %v37, %v36
    %v46 = vld [vmem:[%s4] sm:$0xff]
    %v47 = vld [vmem:[%s4 + $0x8] sm:$0xff]
    %v48 = vld [vmem:[%s4 + $0x10] sm:$0xff]
    %v49 = vld [vmem:[%s4 + $0x18] sm:$0xff]
    %v50 = vld [vmem:[%s4 + $0x20] sm:$0xff]
    %v51 = vld [vmem:[%s4 + $0x28] sm:$0xff]
    %v52 = vld [vmem:[%s4 + $0x30] sm:$0xff]
    %v53 = vld [vmem:[%s4 + $0x38] sm:$0xff]
    %v54 = vld [vmem:[%s4 + $0x40] sm:$0xff]
    %v55 = vld [vmem:[%s4 + $0x48] sm:$0xff]
    %v56 = vld [vmem:[%s4 + $0x50] sm:$0xff]
    %v57 = vld [vmem:[%s4 + $0x58] sm:$0xff]
    %v58 = vld [vmem:[%s4 + $0x60] sm:$0xff]
    %v59 = vld [vmem:[%s4 + $0x68] sm:$0xff]
    %v60 = vld [vmem:[%s4 + $0x70] sm:$0xff]
    %v61 = vld [vmem:[%s4 + $0x78] sm:$0xff]
    %v62 = vld [vmem:[%s4 + $0x80] sm:$0x1]
    %v63 = vld [vmem:[%s1] sm:$0xf]
    %v64 = vld [vmem:[%s1 + $0x4] sm:$0xf]
    %v65 = vld [vmem:[%s1 + $0x8] sm:$0xf]
    %v66 = vld [vmem:[%s1 + $0xc] sm:$0xf]
    %v67 = vld [vmem:[%s1 + $0x10] sm:$0xf]
    %v68 = vld [vmem:[%s1 + $0x14] sm:$0xf]
    %v69 = vld [vmem:[%s1 + $0x18] sm:$0xf]
    %v70 = vld [vmem:[%s1 + $0x1c] sm:$0xf]
    %72 = vset.pattern.permute.xlu0 0
    %73 = vperm.xlu0 %72, %v46
    %v74 = vpop.permute.xlu0 %73
    %77 = vset.pattern.permute.xlu0 0
    %78 = vperm.xlu0 %77, %v47
    %v79 = vpop.permute.xlu0 %78
    %82 = vset.pattern.permute.xlu0 0
    %83 = vperm.xlu0 %82, %v48
    %v84 = vpop.permute.xlu0 %83
    %87 = vset.pattern.permute.xlu0 0
    %88 = vperm.xlu0 %87, %v49
    %v89 = vpop.permute.xlu0 %88
    %92 = vset.pattern.permute.xlu0 0
    %93 = vperm.xlu0 %92, %v50
    %v94 = vpop.permute.xlu0 %93
    %97 = vset.pattern.permute.xlu0 0
    %98 = vperm.xlu0 %97, %v51
    %v99 = vpop.permute.xlu0 %98
    %102 = vset.pattern.permute.xlu0 0
    %103 = vperm.xlu0 %102, %v52
    %v104 = vpop.permute.xlu0 %103
    %107 = vset.pattern.permute.xlu0 0
    %108 = vperm.xlu0 %107, %v53
    %v109 = vpop.permute.xlu0 %108
    %v119 = vunpack.c.l.b16 %v63
    %v120 = vunpack.c.l.b16 %v64
    %v121 = vunpack.c.l.b16 %v65
    %v122 = vunpack.c.l.b16 %v66
    %v123 = vunpack.c.l.b16 %v67
    %v124 = vunpack.c.l.b16 %v68
    %v125 = vunpack.c.l.b16 %v69
    %v126 = vunpack.c.l.b16 %v70
    %v127 = vpack.c.b16 %v120, %v119
    %v128 = vpack.c.b16 %v122, %v121
    %v129 = vpack.c.b16 %v124, %v123
    %v130 = vpack.c.b16 %v126, %v125
    %vm131 = vcmask 261120
    %v133 = vsel %vm131, %v127, 0
    %v136 = vsel %vm131, %v128, 0
    %v139 = vsel %vm131, %v129, 0
    %v142 = vsel %vm131, %v130, 0
    %v145 = vsel %vm131, %v38, 0
    %v148 = vsel %vm131, %v39, 0
    %v151 = vsel %vm131, %v40, 0
    %v154 = vsel %vm131, %v41, 0
    %v157 = vsel %vm131, %v42, 0
    %v160 = vsel %vm131, %v43, 0
    %v163 = vsel %vm131, %v44, 0
    %v166 = vsel %vm131, %v45, 0
    %168 = vmatprep.subr.bf16.mxu0 0
    %169 = vmatpush1.bf16.xpose.msra.mxu0 %v145
    %170 = vmatprep.subr.bf16.mxu0 0
    %171 = vmatpush1.bf16.xpose.msra.mxu0 %v148
    %172 = vmatprep.subr.bf16.mxu0 0
    %173 = vmatpush1.bf16.xpose.msra.mxu0 %v151
    %174 = vmatprep.subr.bf16.mxu0 0
    %175 = vmatpush1.bf16.xpose.msra.mxu0 %v154
    %176 = vmatprep.subr.bf16.mxu0 0
    %177 = vmatpush1.bf16.xpose.msra.mxu0 %v157
    %178 = vmatprep.subr.bf16.mxu0 0
    %179 = vmatpush1.bf16.xpose.msra.mxu0 %v160
    %180 = vmatprep.subr.bf16.mxu0 0
    %181 = vmatpush1.bf16.xpose.msra.mxu0 %v163
    %182 = vmatprep.subr.bf16.mxu0 0
    %183 = vmatpush1.bf16.xpose.msra.mxu0 %v166
    %184 = vmatprep.subr.bf16.mxu0 0
    %185 = vmatpush1.bf16.xpose.msra.mxu0 0
    %186 = vmatprep.subr.bf16.mxu0 0
    %187 = vmatpush1.bf16.xpose.msra.mxu0 0
    %188 = vmatprep.subr.bf16.mxu0 0
    %189 = vmatpush1.bf16.xpose.msra.mxu0 0
    %190 = vmatprep.subr.bf16.mxu0 0
    %191 = vmatpush1.bf16.xpose.msra.mxu0 0
    %192 = vmatprep.subr.bf16.mxu0 0
    %193 = vmatpush1.bf16.xpose.msra.mxu0 0
    %194 = vmatprep.subr.bf16.mxu0 0
    %195 = vmatpush1.bf16.xpose.msra.mxu0 0
    %196 = vmatprep.subr.bf16.mxu0 0
    %197 = vmatpush1.bf16.xpose.msra.mxu0 0
    %198 = vmatprep.subr.bf16.mxu0 0
    %199 = vmatpush1.bf16.xpose.msra.mxu0 0
    %200 = vmatprep.mubr.bf16.mxu0 0
    %201 = vmatmul.mubr.bf16.gmra.mrb[0].mxu0 %v133
    %v202 = vpop.f32.mrb[0].mxu0
    %v203 = vadd.f32 %v74, %v202
    %v204 = vpop.f32.mrb[0].mxu0
    %v205 = vpop.f32.mrb[0].mxu0
    %v206 = vadd.f32 %v79, %v205
    %v207 = vpop.f32.mrb[0].mxu0
    %208 = vmatprep.mubr.bf16.mxu0 0
    %209 = vmatmul.mubr.bf16.gmra.mrb[0].mxu0 %v136
    %v210 = vpop.f32.mrb[0].mxu0
    %v211 = vadd.f32 %v84, %v210
    %v212 = vpop.f32.mrb[0].mxu0
    %v213 = vpop.f32.mrb[0].mxu0
    %v214 = vadd.f32 %v89, %v213
    %v215 = vpop.f32.mrb[0].mxu0
    %216 = vmatprep.mubr.bf16.mxu0 0
    %217 = vmatmul.mubr.bf16.gmra.mrb[0].mxu0 %v139
    %v218 = vpop.f32.mrb[0].mxu0
    %v219 = vadd.f32 %v94, %v218
    %v220 = vpop.f32.mrb[0].mxu0
    %v221 = vpop.f32.mrb[0].mxu0
    %v222 = vadd.f32 %v99, %v221
    %v223 = vpop.f32.mrb[0].mxu0
    %224 = vmatprep.mubr.bf16.mxu0 0
    %225 = vmatmul.mubr.bf16.gmra.mrb[0].mxu0 %v142
    %v226 = vpop.f32.mrb[0].mxu0
    %v227 = vadd.f32 %v104, %v226
    %v228 = vpop.f32.mrb[0].mxu0
    %v229 = vpop.f32.mrb[0].mxu0
    %v230 = vadd.f32 %v109, %v229
    %v231 = vpop.f32.mrb[0].mxu0
    %232 = vdwg.mxu0
    %v233 = vmax.f32 %v203, 0.0
    %v234 = vmax.f32 %v206, 0.0
    %v235 = vmax.f32 %v211, 0.0
    %v236 = vmax.f32 %v214, 0.0
    %v237 = vmax.f32 %v219, 0.0
    %v238 = vmax.f32 %v222, 0.0
    %v239 = vmax.f32 %v227, 0.0
    %v240 = vmax.f32 %v230, 0.0
    %v241 = vld [vmem:[%s2] sm:$0xf]
    %v242 = vld [vmem:[%s2 + $0x4] sm:$0xf]
    %v243 = vld [vmem:[%s2 + $0x8] sm:$0xf]
    %v244 = vld [vmem:[%s2 + $0xc] sm:$0xf]
    %v245 = vpack.c.bf16 %v234, %v233
    %v246 = vpack.c.bf16 %v236, %v235
    %v247 = vpack.c.bf16 %v238, %v237
    %v248 = vpack.c.bf16 %v240, %v239
    %250 = vset.pattern.permute.xlu0 0
    %251 = vperm.xlu0 %250, %v54
    %v252 = vpop.permute.xlu0 %251
    %255 = vset.pattern.permute.xlu0 0
    %256 = vperm.xlu0 %255, %v55
    %v257 = vpop.permute.xlu0 %256
    %260 = vset.pattern.permute.xlu0 0
    %261 = vperm.xlu0 %260, %v56
    %v262 = vpop.permute.xlu0 %261
    %265 = vset.pattern.permute.xlu0 0
    %266 = vperm.xlu0 %265, %v57
    %v267 = vpop.permute.xlu0 %266
    %v273 = vunpack.c.l.b16 %v241
    %v274 = vunpack.c.l.b16 %v242
    %v275 = vunpack.c.l.b16 %v243
    %v276 = vunpack.c.l.b16 %v244
    %v277 = vpack.c.b16 %v274, %v273
    %v278 = vpack.c.b16 %v276, %v275
    %vm279 = vcmask 523264
    %v281 = vsel %vm279, %v277, 0
    %v284 = vsel %vm279, %v278, 0
    %286 = vmatprep.subr.bf16.mxu0 0
    %287 = vmatpush1.bf16.msra.mxu0 %v245
    %288 = vmatprep.subr.bf16.mxu0 0
    %289 = vmatpush1.bf16.msra.mxu0 %v246
    %290 = vmatprep.subr.bf16.mxu0 0
    %291 = vmatpush1.bf16.msra.mxu0 %v247
    %292 = vmatprep.subr.bf16.mxu0 0
    %293 = vmatpush1.bf16.msra.mxu0 %v248
    %294 = vmatprep.subr.bf16.mxu0 0
    %295 = vmatpush1.bf16.msra.mxu0 0
    %296 = vmatprep.subr.bf16.mxu0 0
    %297 = vmatpush1.bf16.msra.mxu0 0
    %298 = vmatprep.subr.bf16.mxu0 0
    %299 = vmatpush1.bf16.msra.mxu0 0
    %300 = vmatprep.subr.bf16.mxu0 0
    %301 = vmatpush1.bf16.msra.mxu0 0
    %302 = vmatprep.subr.bf16.mxu0 0
    %303 = vmatpush1.bf16.msra.mxu0 0
    %304 = vmatprep.subr.bf16.mxu0 0
    %305 = vmatpush1.bf16.msra.mxu0 0
    %306 = vmatprep.subr.bf16.mxu0 0
    %307 = vmatpush1.bf16.msra.mxu0 0
    %308 = vmatprep.subr.bf16.mxu0 0
    %309 = vmatpush1.bf16.msra.mxu0 0
    %310 = vmatprep.subr.bf16.mxu0 0
    %311 = vmatpush1.bf16.msra.mxu0 0
    %312 = vmatprep.subr.bf16.mxu0 0
    %313 = vmatpush1.bf16.msra.mxu0 0
    %314 = vmatprep.subr.bf16.mxu0 0
    %315 = vmatpush1.bf16.msra.mxu0 0
    %316 = vmatprep.subr.bf16.mxu0 0
    %317 = vmatpush1.bf16.msra.mxu0 0
    %318 = vmatprep.mubr.bf16.mxu0 0
    %319 = vmatmul.mubr.bf16.gmra.mrb[0].mxu0 %v281
    %v320 = vpop.f32.mrb[0].mxu0
    %v321 = vadd.f32 %v252, %v320
    %v322 = vpop.f32.mrb[0].mxu0
    %v323 = vpop.f32.mrb[0].mxu0
    %v324 = vadd.f32 %v257, %v323
    %v325 = vpop.f32.mrb[0].mxu0
    %326 = vmatprep.mubr.bf16.mxu0 0
    %327 = vmatmul.mubr.bf16.gmra.mrb[0].mxu0 %v284
    %v328 = vpop.f32.mrb[0].mxu0
    %v329 = vadd.f32 %v262, %v328
    %v330 = vpop.f32.mrb[0].mxu0
    %v331 = vpop.f32.mrb[0].mxu0
    %v332 = vadd.f32 %v267, %v331
    %v333 = vpop.f32.mrb[0].mxu0
    %334 = vdwg.mxu0
    %v335 = vmax.f32 %v321, 0.0
    %v336 = vmax.f32 %v324, 0.0
    %v337 = vmax.f32 %v329, 0.0
    %v338 = vmax.f32 %v332, 0.0
    %v339 = vld [vmem:[%s3] sm:$0xf]
    %v340 = vld [vmem:[%s3 + $0x4] sm:$0xf]
    %v341 = vpack.c.bf16 %v336, %v335
    %v342 = vpack.c.bf16 %v338, %v337
    %344 = vset.pattern.permute.xlu0 0
    %345 = vperm.xlu0 %344, %v58
    %v346 = vpop.permute.xlu0 %345
    %349 = vset.pattern.permute.xlu0 0
    %350 = vperm.xlu0 %349, %v59
    %v351 = vpop.permute.xlu0 %350
    %v355 = vunpack.c.l.b16 %v339
    %v356 = vunpack.c.l.b16 %v340
    %v357 = vpack.c.b16 %v356, %v355
    %v359 = vsel %vm131, %v357, 0
    %361 = vmatprep.subr.bf16.mxu0 0
    %362 = vmatpush1.bf16.msra.mxu0 %v341
    %363 = vmatprep.subr.bf16.mxu0 0
    %364 = vmatpush1.bf16.msra.mxu0 %v342
    %365 = vmatprep.subr.bf16.mxu0 0
    %366 = vmatpush1.bf16.msra.mxu0 0
    %367 = vmatprep.subr.bf16.mxu0 0
    %368 = vmatpush1.bf16.msra.mxu0 0
    %369 = vmatprep.subr.bf16.mxu0 0
    %370 = vmatpush1.bf16.msra.mxu0 0
    %371 = vmatprep.subr.bf16.mxu0 0
    %372 = vmatpush1.bf16.msra.mxu0 0
    %373 = vmatprep.subr.bf16.mxu0 0
    %374 = vmatpush1.bf16.msra.mxu0 0
    %375 = vmatprep.subr.bf16.mxu0 0
    %376 = vmatpush1.bf16.msra.mxu0 0
    %377 = vmatprep.subr.bf16.mxu0 0
    %378 = vmatpush1.bf16.msra.mxu0 0
    %379 = vmatprep.subr.bf16.mxu0 0
    %380 = vmatpush1.bf16.msra.mxu0 0
    %381 = vmatprep.subr.bf16.mxu0 0
    %382 = vmatpush1.bf16.msra.mxu0 0
    %383 = vmatprep.subr.bf16.mxu0 0
    %384 = vmatpush1.bf16.msra.mxu0 0
    %385 = vmatprep.subr.bf16.mxu0 0
    %386 = vmatpush1.bf16.msra.mxu0 0
    %387 = vmatprep.subr.bf16.mxu0 0
    %388 = vmatpush1.bf16.msra.mxu0 0
    %389 = vmatprep.subr.bf16.mxu0 0
    %390 = vmatpush1.bf16.msra.mxu0 0
    %391 = vmatprep.subr.bf16.mxu0 0
    %392 = vmatpush1.bf16.msra.mxu0 0
    %393 = vmatprep.mubr.bf16.mxu0 0
    %394 = vmatmul.mubr.bf16.gmra.mrb[0].mxu0 %v359
    %v395 = vpop.f32.mrb[0].mxu0
    %v396 = vadd.f32 %v346, %v395
    %v397 = vpop.f32.mrb[0].mxu0
    %v398 = vpop.f32.mrb[0].mxu0
    %v399 = vadd.f32 %v351, %v398
    %v400 = vpop.f32.mrb[0].mxu0
    %401 = vdwg.mxu0
    %v402 = vmax.f32 %v396, 0.0
    %v403 = vmax.f32 %v399, 0.0
    %405 = vset.pattern.permute.xlu0 0
    %406 = vperm.xlu0 %405, %v60
    %v407 = vpop.permute.xlu0 %406
    %410 = vset.pattern.permute.xlu0 0
    %411 = vperm.xlu0 %410, %v61
    %v412 = vpop.permute.xlu0 %411
    %v414 = vmul.f32 %v402, %v407
    %v415 = vmul.f32 %v403, %v412
    %v416 = vadd.f32 %v414, %v415
    %v417 = vrot.slane %v416, 4
    %v418 = vadd.f32 %v416, %v417
    %v419 = vrot.slane %v418, 2
    %v420 = vadd.f32 %v418, %v419
    %v421 = vrot.slane %v420, 1
    %v422 = vadd.f32 %v420, %v421
    %424 = vset.pattern.permute.xlu0 0
    %425 = vperm.xlu0 %424, %v62
    %v426 = vpop.permute.xlu0 %425
    %v428 = vadd.f32 %v422, %v426
    %v429 = vxor.u32 %v428, 2147483648
    %v430 = vmul.f32 %v429, 1.442695
    %v431 = vpow.pop %v430
    %v432 = vadd.f32 %v431, 1.0
    %v433 = vrcp.pop %v432
    %v434 = vmul.f32 1.0, %v433
    %435 = vst [vmem:[#allocation2] sm:$0x1] %v434
    // Predicated region
    $region22: #{tpu_custom_call.1} parent=1 // pred_check
      _
    $region23: #{tpu_custom_call.1} parent=1 // pred_check_branch
      %437 = sbr.rel (0) target = $region25
    $region24: #{tpu_custom_call.1} parent=1 // pred_region
      %s439 = ssub.s32 16, 16
      %440 = vsyncadd [#allocation3], %s439
      %s442 = sshll.u32 [#allocation2], 4
      %s443 = int_to_ptr.vmem [resolvable:$true] %s442
      %445 = dma.vmem_to_hbm [thread:$0]  %s443, 16, %s5, [#allocation3]
    $region25: #{tpu_custom_call.1} parent=1 // pred_fallthru
      _
    // Predicated region
    $region26: #{tpu_custom_call.1} parent=1 // pred_check
      _
    $region27: #{tpu_custom_call.1} parent=1 // pred_check_branch
      %447 = sbr.rel (0) target = $region29
    $region28: #{tpu_custom_call.1} parent=1 // pred_region
      %448 = dma.done [#allocation3], 16
    $region29: #{tpu_custom_call.1} parent=1 // pred_fallthru
      _
    %449 = vsyncpa [#allocation3], 1

</llo_original>
